<compile_context>
chip_gen: v5e
topology: v5e:2x2
jax: 0.10.0
libtpu: 0.0.40
codegen_flags: <defaults>
</compile_context>

<pallas_src>
import jax
import jax.numpy as jnp
from jax.experimental import pallas as pl
from jax.experimental.pallas import tpu as pltpu

N_TAGS = 66
N_CLASSES = 10            # TODO(synk): N_classes undefined in the original snippet; fixed to 10.
HIDDEN = 128
MAX_TB = 8192             # rows / grid step: ~4 MiB in + ~8 MiB (lane-padded) out per tile,
                          # ~24 MiB double-buffered VMEM -> covered by vmem_limit_bytes below.


def linear_unit_kernel(x_ref, w2_ref, b2_ref, w3_ref, b3_ref, tag_ref, cls_ref):
    x = x_ref[...]                                        # (tb, 128) f32

    # True-f32 matmuls (multi-pass on the MXU). MXU has enormous slack here,
    # so HIGHEST precision is free and matches the PyTorch f32 Linear exactly.
    z_tag = jnp.dot(x, w2_ref[...],
                    preferred_element_type=jnp.float32,
                    precision=jax.lax.Precision.HIGHEST) + b2_ref[...]   # (tb, 66)
    tag_ref[...] = jax.nn.sigmoid(z_tag)

    z_cls = jnp.dot(x, w3_ref[...],
                    preferred_element_type=jnp.float32,
                    precision=jax.lax.Precision.HIGHEST) + b3_ref[...]   # (tb, 10)
    m = jnp.max(z_cls, axis=-1, keepdims=True)
    shifted = z_cls - m
    lse = jnp.log(jnp.sum(jnp.exp(shifted), axis=-1, keepdims=True))
    cls_ref[...] = shifted - lse


def _round_up(x, m):
    return ((x + m - 1) // m) * m


def _pick_tb(batch):
    """Pick a batch tile: multiple of 8, <= MAX_TB, and an even number of
    grid programs whenever the batch is big enough (so v7x megacore sharding
    of the 'parallel' axis keeps both TensorCores' HBM paths busy)."""
    if batch <= 16:
        return batch                      # single tiny block (block == full dim)
    n_tiles = max(2, pl.cdiv(batch, MAX_TB))
    if n_tiles % 2:
        n_tiles += 1                      # even program count -> balanced split
    return min(MAX_TB, _round_up(pl.cdiv(batch, n_tiles), 8))


def linear_unit_forward(x, w2, b2, w3, b3):
    """x: (B, 128); w2: (128, 66); b2: (1, 66); w3: (128, 10); b3: (1, 10)."""
    B = x.shape[0]
    tb = _pick_tb(B)
    grid = (pl.cdiv(B, tb),)

    # Advisory cost hint (flops / transcendentals / HBM bytes) for XLA.
    flops = 2 * B * HIDDEN * (N_TAGS + N_CLASSES)
    transcendentals = B * (N_TAGS + N_CLASSES + 1)
    bytes_accessed = 4 * (B * HIDDEN + B * (N_TAGS + N_CLASSES)
                          + HIDDEN * (N_TAGS + N_CLASSES) + (N_TAGS + N_CLASSES))

    sig_out, lsm_out = pl.pallas_call(
        linear_unit_kernel,
        out_shape=(
            jax.ShapeDtypeStruct((B, N_TAGS), jnp.float32),
            jax.ShapeDtypeStruct((B, N_CLASSES), jnp.float32),
        ),
        grid_spec=pltpu.PrefetchScalarGridSpec(
            num_scalar_prefetch=0,
            grid=grid,
            in_specs=[
                pl.BlockSpec((tb, HIDDEN), lambda i: (i, 0)),        # x streams over grid
                pl.BlockSpec((HIDDEN, N_TAGS), lambda i: (0, 0)),    # w2 resident
                pl.BlockSpec((1, N_TAGS), lambda i: (0, 0)),         # b2 resident
                pl.BlockSpec((HIDDEN, N_CLASSES), lambda i: (0, 0)), # w3 resident
                pl.BlockSpec((1, N_CLASSES), lambda i: (0, 0)),      # b3 resident
            ],
            out_specs=(
                pl.BlockSpec((tb, N_TAGS), lambda i: (i, 0)),        # sigmoid probs
                pl.BlockSpec((tb, N_CLASSES), lambda i: (i, 0)),     # log-softmax
            ),
        ),
        compiler_params=pltpu.CompilerParams(
            dimension_semantics=("parallel",),   # megacore sharding on v7x
            vmem_limit_bytes=40 << 20,           # big tiles fit on v5e/v6e/v7x
        ),
        cost_estimate=pl.CostEstimate(
            flops=flops,
            transcendentals=transcendentals,
            bytes_accessed=bytes_accessed,
        ),
    )(x, w2, b2, w3, b3)
    return sig_out, lsm_out


def init_params(key):
    # Deterministic init mirroring PyTorch nn.Linear default: U(-1/sqrt(fan_in), +1/sqrt(fan_in)).
    k1, k2, k3, k4 = jax.random.split(key, 4)
    bound = 1.0 / jnp.sqrt(jnp.float32(HIDDEN))
    w2 = jax.random.uniform(k1, (HIDDEN, N_TAGS), jnp.float32, -bound, bound)
    b2 = jax.random.uniform(k2, (1, N_TAGS), jnp.float32, -bound, bound)
    w3 = jax.random.uniform(k3, (HIDDEN, N_CLASSES), jnp.float32, -bound, bound)
    b3 = jax.random.uniform(k4, (1, N_CLASSES), jnp.float32, -bound, bound)
    return w2, b2, w3, b3


if __name__ == "__main__":
    key = jax.random.PRNGKey(0)
    k_in, k_par = jax.random.split(key)

    B = 2
    x = jax.random.normal(k_in, (B, HIDDEN), jnp.float32)
    w2, b2, w3, b3 = init_params(k_par)

    fwd = jax.jit(linear_unit_forward)
    sig_out, lsm_out = fwd(x, w2, b2, w3, b3)
    jax.block_until_ready((sig_out, lsm_out))

    # Reference check in plain JAX (same HIGHEST-precision matmul as the kernel).
    hi = jax.lax.Precision.HIGHEST
    ref_sig = jax.nn.sigmoid(jnp.dot(x, w2, precision=hi) + b2)
    ref_lsm = jax.nn.log_softmax(jnp.dot(x, w3, precision=hi) + b3, axis=-1)
    assert sig_out.shape == (B, N_TAGS) and lsm_out.shape == (B, N_CLASSES)
    assert jnp.allclose(sig_out, ref_sig, atol=1e-5)
    assert jnp.allclose(lsm_out, ref_lsm, atol=1e-5)

    print("KERNEL_OK")
</pallas_src>

<mosaic_0001>
module attributes {stable_mosaic.version = 11 : i64} {
  func.func @linear_unit_kernel(%arg0: i32, %arg1: memref<2x128xf32, #tpu.memory_space<vmem>>, %arg2: memref<128x66xf32, #tpu.memory_space<vmem>>, %arg3: memref<1x66xf32, #tpu.memory_space<vmem>>, %arg4: memref<128x10xf32, #tpu.memory_space<vmem>>, %arg5: memref<1x10xf32, #tpu.memory_space<vmem>>, %arg6: memref<2x66xf32, #tpu.memory_space<vmem>>, %arg7: memref<2x10xf32, #tpu.memory_space<vmem>>) attributes {dimension_semantics = [#tpu.dimension_semantics<parallel>], iteration_bounds = array<i64: 1>, scalar_prefetch = 0 : i64, scratch_operands = 0 : i64, tpu.core_type = #tpu.core_type<tc>, window_params = [{transform_indices = @transform_0, window_bounds = array<i64: 2, 128>}, {pipeline_mode = #tpu.pipeline_mode<synchronous>, transform_indices = @transform_1, window_bounds = array<i64: 128, 66>}, {pipeline_mode = #tpu.pipeline_mode<synchronous>, transform_indices = @transform_2, window_bounds = array<i64: 1, 66>}, {pipeline_mode = #tpu.pipeline_mode<synchronous>, transform_indices = @transform_3, window_bounds = array<i64: 128, 10>}, {pipeline_mode = #tpu.pipeline_mode<synchronous>, transform_indices = @transform_4, window_bounds = array<i64: 1, 10>}, {transform_indices = @transform_5, window_bounds = array<i64: 2, 66>}, {transform_indices = @transform_6, window_bounds = array<i64: 2, 10>}]} {
    %c0 = arith.constant 0 : index
    %c0_0 = arith.constant 0 : index
    %0 = vector.load %arg1[%c0, %c0_0] : memref<2x128xf32, #tpu.memory_space<vmem>>, vector<2x128xf32>
    %c0_1 = arith.constant 0 : index
    %c0_2 = arith.constant 0 : index
    %1 = vector.load %arg2[%c0_1, %c0_2] : memref<128x66xf32, #tpu.memory_space<vmem>>, vector<128x66xf32>
    %cst = arith.constant dense<0.000000e+00> : vector<2x66xf32>
    %2 = tpu.matmul %0, %1, %cst {dimension_numbers = #tpu.dot_dimension_numbers<[1], [0], [0], [1], [0, 0, 1, 1], [], []>, precision = #tpu.contract_precision<fp32>} : vector<2x128xf32>, vector<128x66xf32>, vector<2x66xf32> -> vector<2x66xf32>
    %c0_3 = arith.constant 0 : index
    %c0_4 = arith.constant 0 : index
    %3 = vector.load %arg3[%c0_3, %c0_4] : memref<1x66xf32, #tpu.memory_space<vmem>>, vector<1x66xf32>
    %4 = vector.broadcast %3 : vector<1x66xf32> to vector<2x66xf32>
    %5 = arith.addf %2, %4 : vector<2x66xf32>
    %6 = arith.negf %5 : vector<2x66xf32>
    %7 = math.exp %6 : vector<2x66xf32>
    %cst_5 = arith.constant 1.000000e+00 : f32
    %8 = vector.broadcast %cst_5 : f32 to vector<2x66xf32>
    %9 = arith.addf %8, %7 : vector<2x66xf32>
    %10 = arith.divf %8, %9 : vector<2x66xf32>
    %c0_6 = arith.constant 0 : index
    %c0_7 = arith.constant 0 : index
    %11 = vector.load %arg6[%c0_6, %c0_7] : memref<2x66xf32, #tpu.memory_space<vmem>>, vector<2x66xf32>
    tpu.vector_store %arg6[%c0_6, %c0_7], %10 {strides = array<i32>} : memref<2x66xf32, #tpu.memory_space<vmem>>, vector<2x66xf32>,
    %c0_8 = arith.constant 0 : index
    %c0_9 = arith.constant 0 : index
    %12 = vector.load %arg4[%c0_8, %c0_9] : memref<128x10xf32, #tpu.memory_space<vmem>>, vector<128x10xf32>
    %cst_10 = arith.constant dense<0.000000e+00> : vector<2x10xf32>
    %13 = tpu.matmul %0, %12, %cst_10 {dimension_numbers = #tpu.dot_dimension_numbers<[1], [0], [0], [1], [0, 0, 1, 1], [], []>, precision = #tpu.contract_precision<fp32>} : vector<2x128xf32>, vector<128x10xf32>, vector<2x10xf32> -> vector<2x10xf32>
    %c0_11 = arith.constant 0 : index
    %c0_12 = arith.constant 0 : index
    %14 = vector.load %arg5[%c0_11, %c0_12] : memref<1x10xf32, #tpu.memory_space<vmem>>, vector<1x10xf32>
    %15 = vector.broadcast %14 : vector<1x10xf32> to vector<2x10xf32>
    %16 = arith.addf %13, %15 : vector<2x10xf32>
    %cst_13 = arith.constant dense<0xFF800000> : vector<2xf32>
    %17 = vector.multi_reduction <maximumf>, %16, %cst_13 [1] : vector<2x10xf32> to vector<2xf32>
    %18 = vector.shape_cast %17 : vector<2xf32> to vector<2x1xf32>
    %19 = vector.broadcast %18 : vector<2x1xf32> to vector<2x10xf32>
    %20 = arith.subf %16, %19 : vector<2x10xf32>
    %21 = math.exp %20 : vector<2x10xf32>
    %cst_14 = arith.constant dense<0.000000e+00> : vector<2xf32>
    %22 = vector.multi_reduction <add>, %21, %cst_14 [1] : vector<2x10xf32> to vector<2xf32>
    %23 = vector.shape_cast %22 : vector<2xf32> to vector<2x1xf32>
    %24 = math.log %23 : vector<2x1xf32>
    %25 = vector.broadcast %24 : vector<2x1xf32> to vector<2x10xf32>
    %26 = arith.subf %20, %25 : vector<2x10xf32>
    %c0_15 = arith.constant 0 : index
    %c0_16 = arith.constant 0 : index
    %27 = vector.load %arg7[%c0_15, %c0_16] : memref<2x10xf32, #tpu.memory_space<vmem>>, vector<2x10xf32>
    tpu.vector_store %arg7[%c0_15, %c0_16], %26 {strides = array<i32>} : memref<2x10xf32, #tpu.memory_space<vmem>>, vector<2x10xf32>,
    return
  }
  func.func @transform_0(%arg0: i32) -> (i32, i32) {
    %c0_i32 = arith.constant 0 : i32
    %c0_i32_0 = arith.constant 0 : i32
    return %arg0, %c0_i32 : i32, i32
  }
  func.func @transform_1(%arg0: i32) -> (i32, i32) {
    %c0_i32 = arith.constant 0 : i32
    %c0_i32_0 = arith.constant 0 : i32
    %c0_i32_1 = arith.constant 0 : i32
    return %c0_i32, %c0_i32_0 : i32, i32
  }
  func.func @transform_2(%arg0: i32) -> (i32, i32) {
    %c0_i32 = arith.constant 0 : i32
    %c0_i32_0 = arith.constant 0 : i32
    %c0_i32_1 = arith.constant 0 : i32
    return %c0_i32, %c0_i32_0 : i32, i32
  }
  func.func @transform_3(%arg0: i32) -> (i32, i32) {
    %c0_i32 = arith.constant 0 : i32
    %c0_i32_0 = arith.constant 0 : i32
    %c0_i32_1 = arith.constant 0 : i32
    return %c0_i32, %c0_i32_0 : i32, i32
  }
  func.func @transform_4(%arg0: i32) -> (i32, i32) {
    %c0_i32 = arith.constant 0 : i32
    %c0_i32_0 = arith.constant 0 : i32
    %c0_i32_1 = arith.constant 0 : i32
    return %c0_i32, %c0_i32_0 : i32, i32
  }
  func.func @transform_5(%arg0: i32) -> (i32, i32) {
    %c0_i32 = arith.constant 0 : i32
    %c0_i32_0 = arith.constant 0 : i32
    return %arg0, %c0_i32 : i32, i32
  }
  func.func @transform_6(%arg0: i32) -> (i32, i32) {
    %c0_i32 = arith.constant 0 : i32
    %c0_i32_0 = arith.constant 0 : i32
    return %arg0, %c0_i32 : i32, i32
  }
}

</mosaic_0001>

<llo_original>
// kernel: linear_unit_forward.1
$region0: #{linear_unit_forward.1}
  #allocation0 [shape = 'u32[]', space=smem, size = 0x4, offset = 0x4, fixed_abs, tag = 'smem constant byte address 0x4 - core index']
  #allocation1 [shape = 'u32[72,128]{1,0:T(1,128)}', space=vmem, size = 0x9000, scoped, tag = 'internal scratch']
  %s0 = inlined_call_operand.vmem [shape: f32[2,128], index: 0, kind: input, shape index: {}]
  %s1 = inlined_call_operand.vmem [shape: f32[128,66], index: 1, kind: input, shape index: {}]
  %s2 = inlined_call_operand.vmem [shape: f32[1,66], index: 2, kind: input, shape index: {}]
  %s3 = inlined_call_operand.vmem [shape: f32[128,10], index: 3, kind: input, shape index: {}]
  %s4 = inlined_call_operand.vmem [shape: f32[1,10], index: 4, kind: input, shape index: {}]
  %s5 = inlined_call_operand.hbm [shape: f32[2,66], index: 5, kind: output, shape index: {0}]
  %s6 = inlined_call_operand.hbm [shape: f32[2,10], index: 6, kind: output, shape index: {1}]
  %7 = xla_tuple %s5, %s6
  %s8 = sld [smem:[#allocation0]]
  $region38: #{linear_unit_forward.1} parent=0
    _
  %s10 = ssub.s32 1, %s8
  %s11 = scalar_select 0, %s10, %s8
  $region1: #{linear_unit_forward.1} parent=0
    #allocation2 [shape = 'u8[1024]{0}', space=vmem, size = 0x400, scoped, tag = 'output window, operand 0, single buffered']
    #allocation3 [shape = 's32[1]{0}', space=sflag, size = 0x4, scoped, tag = 'scoped memory for linear_unit_forward.1']
    #allocation4 [shape = 'u8[1024]{0}', space=vmem, size = 0x400, scoped, tag = 'output window, operand 1, single buffered']
    #allocation5 [shape = 's32[1]{0}', space=sflag, size = 0x4, scoped, tag = 'scoped memory for linear_unit_forward.1']
    %12 = vsyncpa [#allocation3], 0
    %13 = vsyncpa [#allocation5], 0
    // Predicated region
    $region2: #{linear_unit_forward.1} parent=1 // pred_check
      _
    $region3: #{linear_unit_forward.1} parent=1 // pred_check_branch
      %15 = sbr.rel (0) target = $region5
    $region4: #{linear_unit_forward.1} parent=1 // pred_region
      _
    $region5: #{linear_unit_forward.1} parent=1 // pred_fallthru
      _
    // Predicated region
    $region6: #{linear_unit_forward.1} parent=1 // pred_check
      _
    $region7: #{linear_unit_forward.1} parent=1 // pred_check_branch
      %17 = sbr.rel (0) target = $region9
    $region8: #{linear_unit_forward.1} parent=1 // pred_region
      _
    $region9: #{linear_unit_forward.1} parent=1 // pred_fallthru
      _
    // Predicated region
    $region10: #{linear_unit_forward.1} parent=1 // pred_check
      _
    $region11: #{linear_unit_forward.1} parent=1 // pred_check_branch
      %19 = sbr.rel (0) target = $region13
    $region12: #{linear_unit_forward.1} parent=1 // pred_region
      _
    $region13: #{linear_unit_forward.1} parent=1 // pred_fallthru
      _
    // Predicated region
    $region14: #{linear_unit_forward.1} parent=1 // pred_check
      _
    $region15: #{linear_unit_forward.1} parent=1 // pred_check_branch
      %21 = sbr.rel (0) target = $region17
    $region16: #{linear_unit_forward.1} parent=1 // pred_region
      _
    $region17: #{linear_unit_forward.1} parent=1 // pred_fallthru
      _
    // Predicated region
    $region18: #{linear_unit_forward.1} parent=1 // pred_check
      _
    $region19: #{linear_unit_forward.1} parent=1 // pred_check_branch
      %23 = sbr.rel (0) target = $region21
    $region20: #{linear_unit_forward.1} parent=1 // pred_region
      _
    $region21: #{linear_unit_forward.1} parent=1 // pred_fallthru
      _
    %v24 = vld [vmem:[%s0] sm:$0x3]
    %v25 = vld [vmem:[%s1] sm:$0xff]
    %v26 = vld [vmem:[%s1 + $0x8] sm:$0xff]
    %v27 = vld [vmem:[%s1 + $0x10] sm:$0xff]
    %v28 = vld [vmem:[%s1 + $0x18] sm:$0xff]
    %v29 = vld [vmem:[%s1 + $0x20] sm:$0xff]
    %v30 = vld [vmem:[%s1 + $0x28] sm:$0xff]
    %v31 = vld [vmem:[%s1 + $0x30] sm:$0xff]
    %v32 = vld [vmem:[%s1 + $0x38] sm:$0xff]
    %v33 = vld [vmem:[%s1 + $0x40] sm:$0xff]
    %v34 = vld [vmem:[%s1 + $0x48] sm:$0xff]
    %v35 = vld [vmem:[%s1 + $0x50] sm:$0xff]
    %v36 = vld [vmem:[%s1 + $0x58] sm:$0xff]
    %v37 = vld [vmem:[%s1 + $0x60] sm:$0xff]
    %v38 = vld [vmem:[%s1 + $0x68] sm:$0xff]
    %v39 = vld [vmem:[%s1 + $0x70] sm:$0xff]
    %v40 = vld [vmem:[%s1 + $0x78] sm:$0xff]
    %v41 = vld [vmem:[%s2] sm:$0x1]
    %v43 = vperm.slane %v41, 0
    %v45 = vand.u32 %v40, 4294901760
    %46 = vmatpush.msra.mxu0 %v45
    %v47 = vand.u32 %v39, 4294901760
    %48 = vmatpush.msra.mxu0 %v47
    %v49 = vand.u32 %v38, 4294901760
    %50 = vmatpush.msra.mxu0 %v49
    %v51 = vand.u32 %v37, 4294901760
    %52 = vmatpush.msra.mxu0 %v51
    %v53 = vand.u32 %v36, 4294901760
    %54 = vmatpush.msra.mxu0 %v53
    %v55 = vand.u32 %v35, 4294901760
    %56 = vmatpush.msra.mxu0 %v55
    %v57 = vand.u32 %v34, 4294901760
    %58 = vmatpush.msra.mxu0 %v57
    %v59 = vand.u32 %v33, 4294901760
    %60 = vmatpush.msra.mxu0 %v59
    %v61 = vand.u32 %v32, 4294901760
    %62 = vmatpush.msra.mxu0 %v61
    %v63 = vand.u32 %v31, 4294901760
    %64 = vmatpush.msra.mxu0 %v63
    %v65 = vand.u32 %v30, 4294901760
    %66 = vmatpush.msra.mxu0 %v65
    %v67 = vand.u32 %v29, 4294901760
    %68 = vmatpush.msra.mxu0 %v67
    %v69 = vand.u32 %v28, 4294901760
    %70 = vmatpush.msra.mxu0 %v69
    %v71 = vand.u32 %v27, 4294901760
    %72 = vmatpush.msra.mxu0 %v71
    %v73 = vand.u32 %v26, 4294901760
    %74 = vmatpush.msra.mxu0 %v73
    %v75 = vand.u32 %v25, 4294901760
    %76 = vmatpush.msra.mxu0 %v75
    %v77 = vand.u32 %v24, 4294901760
    %v78 = vsub.f32 %v24, %v77
    %v79 = vand.u32 %v78, 4294901760
    %v80 = vsub.f32 %v78, %v79
    %v81 = vand.u32 %v80, 4294901760
    %82 = vmatmul.f32.gmra.mxu0 %v81
    %v83 = vpop.f32.mrf.mxu0
    %v84 = vadd.f32 %v43, %v83
    %85 = vdwg.mxu0
    %v86 = vand.u32 %v40, 4294901760
    %v87 = vsub.f32 %v40, %v86
    %v88 = vand.u32 %v87, 4294901760
    %v89 = vsub.f32 %v87, %v88
    %v90 = vand.u32 %v89, 4294901760
    %91 = vmatpush.msra.mxu0 %v90
    %v92 = vand.u32 %v39, 4294901760
    %v93 = vsub.f32 %v39, %v92
    %v94 = vand.u32 %v93, 4294901760
    %v95 = vsub.f32 %v93, %v94
    %v96 = vand.u32 %v95, 4294901760
    %97 = vmatpush.msra.mxu0 %v96
    %v98 = vand.u32 %v38, 4294901760
    %v99 = vsub.f32 %v38, %v98
    %v100 = vand.u32 %v99, 4294901760
    %v101 = vsub.f32 %v99, %v100
    %v102 = vand.u32 %v101, 4294901760
    %103 = vmatpush.msra.mxu0 %v102
    %v104 = vand.u32 %v37, 4294901760
    %v105 = vsub.f32 %v37, %v104
    %v106 = vand.u32 %v105, 4294901760
    %v107 = vsub.f32 %v105, %v106
    %v108 = vand.u32 %v107, 4294901760
    %109 = vmatpush.msra.mxu0 %v108
    %v110 = vand.u32 %v36, 4294901760
    %v111 = vsub.f32 %v36, %v110
    %v112 = vand.u32 %v111, 4294901760
    %v113 = vsub.f32 %v111, %v112
    %v114 = vand.u32 %v113, 4294901760
    %115 = vmatpush.msra.mxu0 %v114
    %v116 = vand.u32 %v35, 4294901760
    %v117 = vsub.f32 %v35, %v116
    %v118 = vand.u32 %v117, 4294901760
    %v119 = vsub.f32 %v117, %v118
    %v120 = vand.u32 %v119, 4294901760
    %121 = vmatpush.msra.mxu0 %v120
    %v122 = vand.u32 %v34, 4294901760
    %v123 = vsub.f32 %v34, %v122
    %v124 = vand.u32 %v123, 4294901760
    %v125 = vsub.f32 %v123, %v124
    %v126 = vand.u32 %v125, 4294901760
    %127 = vmatpush.msra.mxu0 %v126
    %v128 = vand.u32 %v33, 4294901760
    %v129 = vsub.f32 %v33, %v128
    %v130 = vand.u32 %v129, 4294901760
    %v131 = vsub.f32 %v129, %v130
    %v132 = vand.u32 %v131, 4294901760
    %133 = vmatpush.msra.mxu0 %v132
    %v134 = vand.u32 %v32, 4294901760
    %v135 = vsub.f32 %v32, %v134
    %v136 = vand.u32 %v135, 4294901760
    %v137 = vsub.f32 %v135, %v136
    %v138 = vand.u32 %v137, 4294901760
    %139 = vmatpush.msra.mxu0 %v138
    %v140 = vand.u32 %v31, 4294901760
    %v141 = vsub.f32 %v31, %v140
    %v142 = vand.u32 %v141, 4294901760
    %v143 = vsub.f32 %v141, %v142
    %v144 = vand.u32 %v143, 4294901760
    %145 = vmatpush.msra.mxu0 %v144
    %v146 = vand.u32 %v30, 4294901760
    %v147 = vsub.f32 %v30, %v146
    %v148 = vand.u32 %v147, 4294901760
    %v149 = vsub.f32 %v147, %v148
    %v150 = vand.u32 %v149, 4294901760
    %151 = vmatpush.msra.mxu0 %v150
    %v152 = vand.u32 %v29, 4294901760
    %v153 = vsub.f32 %v29, %v152
    %v154 = vand.u32 %v153, 4294901760
    %v155 = vsub.f32 %v153, %v154
    %v156 = vand.u32 %v155, 4294901760
    %157 = vmatpush.msra.mxu0 %v156
    %v158 = vand.u32 %v28, 4294901760
    %v159 = vsub.f32 %v28, %v158
    %v160 = vand.u32 %v159, 4294901760
    %v161 = vsub.f32 %v159, %v160
    %v162 = vand.u32 %v161, 4294901760
    %163 = vmatpush.msra.mxu0 %v162
    %v164 = vand.u32 %v27, 4294901760
    %v165 = vsub.f32 %v27, %v164
    %v166 = vand.u32 %v165, 4294901760
    %v167 = vsub.f32 %v165, %v166
    %v168 = vand.u32 %v167, 4294901760
    %169 = vmatpush.msra.mxu0 %v168
    %v170 = vand.u32 %v26, 4294901760
    %v171 = vsub.f32 %v26, %v170
    %v172 = vand.u32 %v171, 4294901760
    %v173 = vsub.f32 %v171, %v172
    %v174 = vand.u32 %v173, 4294901760
    %175 = vmatpush.msra.mxu0 %v174
    %v176 = vand.u32 %v25, 4294901760
    %v177 = vsub.f32 %v25, %v176
    %v178 = vand.u32 %v177, 4294901760
    %v179 = vsub.f32 %v177, %v178
    %v180 = vand.u32 %v179, 4294901760
    %181 = vmatpush.msra.mxu0 %v180
    %v182 = vand.u32 %v24, 4294901760
    %183 = vmatmul.f32.gmra.mxu0 %v182
    %v184 = vpop.f32.mrf.mxu0
    %v185 = vadd.f32 %v84, %v184
    %186 = vdwg.mxu0
    %v187 = vand.u32 %v40, 4294901760
    %v188 = vsub.f32 %v40, %v187
    %189 = vmatpush.msra.mxu0 %v188
    %v190 = vand.u32 %v39, 4294901760
    %v191 = vsub.f32 %v39, %v190
    %192 = vmatpush.msra.mxu0 %v191
    %v193 = vand.u32 %v38, 4294901760
    %v194 = vsub.f32 %v38, %v193
    %195 = vmatpush.msra.mxu0 %v194
    %v196 = vand.u32 %v37, 4294901760
    %v197 = vsub.f32 %v37, %v196
    %198 = vmatpush.msra.mxu0 %v197
    %v199 = vand.u32 %v36, 4294901760
    %v200 = vsub.f32 %v36, %v199
    %201 = vmatpush.msra.mxu0 %v200
    %v202 = vand.u32 %v35, 4294901760
    %v203 = vsub.f32 %v35, %v202
    %204 = vmatpush.msra.mxu0 %v203
    %v205 = vand.u32 %v34, 4294901760
    %v206 = vsub.f32 %v34, %v205
    %207 = vmatpush.msra.mxu0 %v206
    %v208 = vand.u32 %v33, 4294901760
    %v209 = vsub.f32 %v33, %v208
    %210 = vmatpush.msra.mxu0 %v209
    %v211 = vand.u32 %v32, 4294901760
    %v212 = vsub.f32 %v32, %v211
    %213 = vmatpush.msra.mxu0 %v212
    %v214 = vand.u32 %v31, 4294901760
    %v215 = vsub.f32 %v31, %v214
    %216 = vmatpush.msra.mxu0 %v215
    %v217 = vand.u32 %v30, 4294901760
    %v218 = vsub.f32 %v30, %v217
    %219 = vmatpush.msra.mxu0 %v218
    %v220 = vand.u32 %v29, 4294901760
    %v221 = vsub.f32 %v29, %v220
    %222 = vmatpush.msra.mxu0 %v221
    %v223 = vand.u32 %v28, 4294901760
    %v224 = vsub.f32 %v28, %v223
    %225 = vmatpush.msra.mxu0 %v224
    %v226 = vand.u32 %v27, 4294901760
    %v227 = vsub.f32 %v27, %v226
    %228 = vmatpush.msra.mxu0 %v227
    %v229 = vand.u32 %v26, 4294901760
    %v230 = vsub.f32 %v26, %v229
    %231 = vmatpush.msra.mxu0 %v230
    %v232 = vand.u32 %v25, 4294901760
    %v233 = vsub.f32 %v25, %v232
    %234 = vmatpush.msra.mxu0 %v233
    %v235 = vand.u32 %v24, 4294901760
    %v236 = vsub.f32 %v24, %v235
    %237 = vmatmul.f32.gmra.mxu0 %v236
    %v238 = vpop.f32.mrf.mxu0
    %v239 = vadd.f32 %v185, %v238
    %240 = vdwg.mxu0
    %v241 = vand.u32 %v40, 4294901760
    %242 = vmatpush.msra.mxu0 %v241
    %v243 = vand.u32 %v39, 4294901760
    %244 = vmatpush.msra.mxu0 %v243
    %v245 = vand.u32 %v38, 4294901760
    %246 = vmatpush.msra.mxu0 %v245
    %v247 = vand.u32 %v37, 4294901760
    %248 = vmatpush.msra.mxu0 %v247
    %v249 = vand.u32 %v36, 4294901760
    %250 = vmatpush.msra.mxu0 %v249
    %v251 = vand.u32 %v35, 4294901760
    %252 = vmatpush.msra.mxu0 %v251
    %v253 = vand.u32 %v34, 4294901760
    %254 = vmatpush.msra.mxu0 %v253
    %v255 = vand.u32 %v33, 4294901760
    %256 = vmatpush.msra.mxu0 %v255
    %v257 = vand.u32 %v32, 4294901760
    %258 = vmatpush.msra.mxu0 %v257
    %v259 = vand.u32 %v31, 4294901760
    %260 = vmatpush.msra.mxu0 %v259
    %v261 = vand.u32 %v30, 4294901760
    %262 = vmatpush.msra.mxu0 %v261
    %v263 = vand.u32 %v29, 4294901760
    %264 = vmatpush.msra.mxu0 %v263
    %v265 = vand.u32 %v28, 4294901760
    %266 = vmatpush.msra.mxu0 %v265
    %v267 = vand.u32 %v27, 4294901760
    %268 = vmatpush.msra.mxu0 %v267
    %v269 = vand.u32 %v26, 4294901760
    %270 = vmatpush.msra.mxu0 %v269
    %v271 = vand.u32 %v25, 4294901760
    %272 = vmatpush.msra.mxu0 %v271
    %v273 = vand.u32 %v24, 4294901760
    %v274 = vsub.f32 %v24, %v273
    %v275 = vand.u32 %v274, 4294901760
    %276 = vmatmul.f32.gmra.mxu0 %v275
    %v277 = vpop.f32.mrf.mxu0
    %v278 = vadd.f32 %v239, %v277
    %279 = vdwg.mxu0
    %v280 = vand.u32 %v40, 4294901760
    %v281 = vsub.f32 %v40, %v280
    %v282 = vand.u32 %v281, 4294901760
    %283 = vmatpush.msra.mxu0 %v282
    %v284 = vand.u32 %v39, 4294901760
    %v285 = vsub.f32 %v39, %v284
    %v286 = vand.u32 %v285, 4294901760
    %287 = vmatpush.msra.mxu0 %v286
    %v288 = vand.u32 %v38, 4294901760
    %v289 = vsub.f32 %v38, %v288
    %v290 = vand.u32 %v289, 4294901760
    %291 = vmatpush.msra.mxu0 %v290
    %v292 = vand.u32 %v37, 4294901760
    %v293 = vsub.f32 %v37, %v292
    %v294 = vand.u32 %v293, 4294901760
    %295 = vmatpush.msra.mxu0 %v294
    %v296 = vand.u32 %v36, 4294901760
    %v297 = vsub.f32 %v36, %v296
    %v298 = vand.u32 %v297, 4294901760
    %299 = vmatpush.msra.mxu0 %v298
    %v300 = vand.u32 %v35, 4294901760
    %v301 = vsub.f32 %v35, %v300
    %v302 = vand.u32 %v301, 4294901760
    %303 = vmatpush.msra.mxu0 %v302
    %v304 = vand.u32 %v34, 4294901760
    %v305 = vsub.f32 %v34, %v304
    %v306 = vand.u32 %v305, 4294901760
    %307 = vmatpush.msra.mxu0 %v306
    %v308 = vand.u32 %v33, 4294901760
    %v309 = vsub.f32 %v33, %v308
    %v310 = vand.u32 %v309, 4294901760
    %311 = vmatpush.msra.mxu0 %v310
    %v312 = vand.u32 %v32, 4294901760
    %v313 = vsub.f32 %v32, %v312
    %v314 = vand.u32 %v313, 4294901760
    %315 = vmatpush.msra.mxu0 %v314
    %v316 = vand.u32 %v31, 4294901760
    %v317 = vsub.f32 %v31, %v316
    %v318 = vand.u32 %v317, 4294901760
    %319 = vmatpush.msra.mxu0 %v318
    %v320 = vand.u32 %v30, 4294901760
    %v321 = vsub.f32 %v30, %v320
    %v322 = vand.u32 %v321, 4294901760
    %323 = vmatpush.msra.mxu0 %v322
    %v324 = vand.u32 %v29, 4294901760
    %v325 = vsub.f32 %v29, %v324
    %v326 = vand.u32 %v325, 4294901760
    %327 = vmatpush.msra.mxu0 %v326
    %v328 = vand.u32 %v28, 4294901760
    %v329 = vsub.f32 %v28, %v328
    %v330 = vand.u32 %v329, 4294901760
    %331 = vmatpush.msra.mxu0 %v330
    %v332 = vand.u32 %v27, 4294901760
    %v333 = vsub.f32 %v27, %v332
    %v334 = vand.u32 %v333, 4294901760
    %335 = vmatpush.msra.mxu0 %v334
    %v336 = vand.u32 %v26, 4294901760
    %v337 = vsub.f32 %v26, %v336
    %v338 = vand.u32 %v337, 4294901760
    %339 = vmatpush.msra.mxu0 %v338
    %v340 = vand.u32 %v25, 4294901760
    %v341 = vsub.f32 %v25, %v340
    %v342 = vand.u32 %v341, 4294901760
    %343 = vmatpush.msra.mxu0 %v342
    %v344 = vand.u32 %v24, 4294901760
    %345 = vmatmul.f32.gmra.mxu0 %v344
    %v346 = vpop.f32.mrf.mxu0
    %v347 = vadd.f32 %v278, %v346
    %348 = vdwg.mxu0
    %v349 = vand.u32 %v40, 4294901760
    %350 = vmatpush.msra.mxu0 %v349
    %v351 = vand.u32 %v39, 4294901760
    %352 = vmatpush.msra.mxu0 %v351
    %v353 = vand.u32 %v38, 4294901760
    %354 = vmatpush.msra.mxu0 %v353
    %v355 = vand.u32 %v37, 4294901760
    %356 = vmatpush.msra.mxu0 %v355
    %v357 = vand.u32 %v36, 4294901760
    %358 = vmatpush.msra.mxu0 %v357
    %v359 = vand.u32 %v35, 4294901760
    %360 = vmatpush.msra.mxu0 %v359
    %v361 = vand.u32 %v34, 4294901760
    %362 = vmatpush.msra.mxu0 %v361
    %v363 = vand.u32 %v33, 4294901760
    %364 = vmatpush.msra.mxu0 %v363
    %v365 = vand.u32 %v32, 4294901760
    %366 = vmatpush.msra.mxu0 %v365
    %v367 = vand.u32 %v31, 4294901760
    %368 = vmatpush.msra.mxu0 %v367
    %v369 = vand.u32 %v30, 4294901760
    %370 = vmatpush.msra.mxu0 %v369
    %v371 = vand.u32 %v29, 4294901760
    %372 = vmatpush.msra.mxu0 %v371
    %v373 = vand.u32 %v28, 4294901760
    %374 = vmatpush.msra.mxu0 %v373
    %v375 = vand.u32 %v27, 4294901760
    %376 = vmatpush.msra.mxu0 %v375
    %v377 = vand.u32 %v26, 4294901760
    %378 = vmatpush.msra.mxu0 %v377
    %v379 = vand.u32 %v25, 4294901760
    %380 = vmatpush.msra.mxu0 %v379
    %v381 = vand.u32 %v24, 4294901760
    %382 = vmatmul.f32.gmra.mxu0 %v381
    %v383 = vpop.f32.mrf.mxu0
    %v384 = vadd.f32 %v347, %v383
    %385 = vdwg.mxu0
    %v386 = vxor.u32 %v384, 2147483648
    %v387 = vmul.f32 %v386, 1.442695
    %v388 = vpow.pop %v387
    %v389 = vadd.f32 %v388, 1.0
    %v390 = vrcp.pop %v389
    %v391 = vmul.f32 %v389, %v390
    %v392 = vsub.f32 1.0, %v391
    %v393 = vmul.f32 %v390, %v392
    %v394 = vadd.f32 %v390, %v393
    %vm395 = vweird.f32 %v389
    %vm396 = vweird.f32 %v390
    %vm397 = vmor %vm395, %vm396
    %v398 = vsel %vm397, %v390, %v394
    %v399 = vand.u32 2147483647, %v389
    %vm400 = vcmp.eq.f32.partialorder %v399, 8.507059e+37
    %v401 = vand.u32 %v389, 2147483648
    %v402 = vor.u32 1.1754944e-38, %v401
    %v403 = vsel %vm400, %v402, %v398
    %v404 = vmul.f32 1.0, %v403
    %vm405 = vcmask 533504
    %406 = vst.msk [vmem:[#allocation2] sm:$0x3] %vm405, %v404
    %v407 = vld [vmem:[%s3] sm:$0xff]
    %v408 = vld [vmem:[%s3 + $0x8] sm:$0xff]
    %v409 = vld [vmem:[%s3 + $0x10] sm:$0xff]
    %v410 = vld [vmem:[%s3 + $0x18] sm:$0xff]
    %v411 = vld [vmem:[%s3 + $0x20] sm:$0xff]
    %v412 = vld [vmem:[%s3 + $0x28] sm:$0xff]
    %v413 = vld [vmem:[%s3 + $0x30] sm:$0xff]
    %v414 = vld [vmem:[%s3 + $0x38] sm:$0xff]
    %v415 = vld [vmem:[%s3 + $0x40] sm:$0xff]
    %v416 = vld [vmem:[%s3 + $0x48] sm:$0xff]
    %v417 = vld [vmem:[%s3 + $0x50] sm:$0xff]
    %v418 = vld [vmem:[%s3 + $0x58] sm:$0xff]
    %v419 = vld [vmem:[%s3 + $0x60] sm:$0xff]
    %v420 = vld [vmem:[%s3 + $0x68] sm:$0xff]
    %v421 = vld [vmem:[%s3 + $0x70] sm:$0xff]
    %v422 = vld [vmem:[%s3 + $0x78] sm:$0xff]
    %v423 = vld [vmem:[%s4] sm:$0x1]
    %v425 = vperm.slane %v423, 0
    %v427 = vand.u32 %v422, 4294901760
    %428 = vmatpush.msra.mxu0 %v427
    %v429 = vand.u32 %v421, 4294901760
    %430 = vmatpush.msra.mxu0 %v429
    %v431 = vand.u32 %v420, 4294901760
    %432 = vmatpush.msra.mxu0 %v431
    %v433 = vand.u32 %v419, 4294901760
    %434 = vmatpush.msra.mxu0 %v433
    %v435 = vand.u32 %v418, 4294901760
    %436 = vmatpush.msra.mxu0 %v435
    %v437 = vand.u32 %v417, 4294901760
    %438 = vmatpush.msra.mxu0 %v437
    %v439 = vand.u32 %v416, 4294901760
    %440 = vmatpush.msra.mxu0 %v439
    %v441 = vand.u32 %v415, 4294901760
    %442 = vmatpush.msra.mxu0 %v441
    %v443 = vand.u32 %v414, 4294901760
    %444 = vmatpush.msra.mxu0 %v443
    %v445 = vand.u32 %v413, 4294901760
    %446 = vmatpush.msra.mxu0 %v445
    %v447 = vand.u32 %v412, 4294901760
    %448 = vmatpush.msra.mxu0 %v447
    %v449 = vand.u32 %v411, 4294901760
    %450 = vmatpush.msra.mxu0 %v449
    %v451 = vand.u32 %v410, 4294901760
    %452 = vmatpush.msra.mxu0 %v451
    %v453 = vand.u32 %v409, 4294901760
    %454 = vmatpush.msra.mxu0 %v453
    %v455 = vand.u32 %v408, 4294901760
    %456 = vmatpush.msra.mxu0 %v455
    %v457 = vand.u32 %v407, 4294901760
    %458 = vmatpush.msra.mxu0 %v457
    %v459 = vand.u32 %v24, 4294901760
    %v460 = vsub.f32 %v24, %v459
    %v461 = vand.u32 %v460, 4294901760
    %v462 = vsub.f32 %v460, %v461
    %v463 = vand.u32 %v462, 4294901760
    %464 = vmatmul.f32.gmra.mxu0 %v463
    %v465 = vpop.f32.mrf.mxu0
    %v466 = vadd.f32 %v425, %v465
    %467 = vdwg.mxu0
    %v468 = vand.u32 %v422, 4294901760
    %v469 = vsub.f32 %v422, %v468
    %v470 = vand.u32 %v469, 4294901760
    %v471 = vsub.f32 %v469, %v470
    %v472 = vand.u32 %v471, 4294901760
    %473 = vmatpush.msra.mxu0 %v472
    %v474 = vand.u32 %v421, 4294901760
    %v475 = vsub.f32 %v421, %v474
    %v476 = vand.u32 %v475, 4294901760
    %v477 = vsub.f32 %v475, %v476
    %v478 = vand.u32 %v477, 4294901760
    %479 = vmatpush.msra.mxu0 %v478
    %v480 = vand.u32 %v420, 4294901760
    %v481 = vsub.f32 %v420, %v480
    %v482 = vand.u32 %v481, 4294901760
    %v483 = vsub.f32 %v481, %v482
    %v484 = vand.u32 %v483, 4294901760
    %485 = vmatpush.msra.mxu0 %v484
    %v486 = vand.u32 %v419, 4294901760
    %v487 = vsub.f32 %v419, %v486
    %v488 = vand.u32 %v487, 4294901760
    %v489 = vsub.f32 %v487, %v488
    %v490 = vand.u32 %v489, 4294901760
    %491 = vmatpush.msra.mxu0 %v490
    %v492 = vand.u32 %v418, 4294901760
    %v493 = vsub.f32 %v418, %v492
    %v494 = vand.u32 %v493, 4294901760
    %v495 = vsub.f32 %v493, %v494
    %v496 = vand.u32 %v495, 4294901760
    %497 = vmatpush.msra.mxu0 %v496
    %v498 = vand.u32 %v417, 4294901760
    %v499 = vsub.f32 %v417, %v498
    %v500 = vand.u32 %v499, 4294901760
    %v501 = vsub.f32 %v499, %v500
    %v502 = vand.u32 %v501, 4294901760
    %503 = vmatpush.msra.mxu0 %v502
    %v504 = vand.u32 %v416, 4294901760
    %v505 = vsub.f32 %v416, %v504
    %v506 = vand.u32 %v505, 4294901760
    %v507 = vsub.f32 %v505, %v506
    %v508 = vand.u32 %v507, 4294901760
    %509 = vmatpush.msra.mxu0 %v508
    %v510 = vand.u32 %v415, 4294901760
    %v511 = vsub.f32 %v415, %v510
    %v512 = vand.u32 %v511, 4294901760
    %v513 = vsub.f32 %v511, %v512
    %v514 = vand.u32 %v513, 4294901760
    %515 = vmatpush.msra.mxu0 %v514
    %v516 = vand.u32 %v414, 4294901760
    %v517 = vsub.f32 %v414, %v516
    %v518 = vand.u32 %v517, 4294901760
    %v519 = vsub.f32 %v517, %v518
    %v520 = vand.u32 %v519, 4294901760
    %521 = vmatpush.msra.mxu0 %v520
    %v522 = vand.u32 %v413, 4294901760
    %v523 = vsub.f32 %v413, %v522
    %v524 = vand.u32 %v523, 4294901760
    %v525 = vsub.f32 %v523, %v524
    %v526 = vand.u32 %v525, 4294901760
    %527 = vmatpush.msra.mxu0 %v526
    %v528 = vand.u32 %v412, 4294901760
    %v529 = vsub.f32 %v412, %v528
    %v530 = vand.u32 %v529, 4294901760
    %v531 = vsub.f32 %v529, %v530
    %v532 = vand.u32 %v531, 4294901760
    %533 = vmatpush.msra.mxu0 %v532
    %v534 = vand.u32 %v411, 4294901760
    %v535 = vsub.f32 %v411, %v534
    %v536 = vand.u32 %v535, 4294901760
    %v537 = vsub.f32 %v535, %v536
    %v538 = vand.u32 %v537, 4294901760
    %539 = vmatpush.msra.mxu0 %v538
    %v540 = vand.u32 %v410, 4294901760
    %v541 = vsub.f32 %v410, %v540
    %v542 = vand.u32 %v541, 4294901760
    %v543 = vsub.f32 %v541, %v542
    %v544 = vand.u32 %v543, 4294901760
    %545 = vmatpush.msra.mxu0 %v544
    %v546 = vand.u32 %v409, 4294901760
    %v547 = vsub.f32 %v409, %v546
    %v548 = vand.u32 %v547, 4294901760
    %v549 = vsub.f32 %v547, %v548
    %v550 = vand.u32 %v549, 4294901760
    %551 = vmatpush.msra.mxu0 %v550
    %v552 = vand.u32 %v408, 4294901760
    %v553 = vsub.f32 %v408, %v552
    %v554 = vand.u32 %v553, 4294901760
    %v555 = vsub.f32 %v553, %v554
    %v556 = vand.u32 %v555, 4294901760
    %557 = vmatpush.msra.mxu0 %v556
    %v558 = vand.u32 %v407, 4294901760
    %v559 = vsub.f32 %v407, %v558
    %v560 = vand.u32 %v559, 4294901760
    %v561 = vsub.f32 %v559, %v560
    %v562 = vand.u32 %v561, 4294901760
    %563 = vmatpush.msra.mxu0 %v562
    %v564 = vand.u32 %v24, 4294901760
    %565 = vmatmul.f32.gmra.mxu0 %v564
    %v566 = vpop.f32.mrf.mxu0
    %v567 = vadd.f32 %v466, %v566
    %568 = vdwg.mxu0
    %v569 = vand.u32 %v422, 4294901760
    %v570 = vsub.f32 %v422, %v569
    %571 = vmatpush.msra.mxu0 %v570
    %v572 = vand.u32 %v421, 4294901760
    %v573 = vsub.f32 %v421, %v572
    %574 = vmatpush.msra.mxu0 %v573
    %v575 = vand.u32 %v420, 4294901760
    %v576 = vsub.f32 %v420, %v575
    %577 = vmatpush.msra.mxu0 %v576
    %v578 = vand.u32 %v419, 4294901760
    %v579 = vsub.f32 %v419, %v578
    %580 = vmatpush.msra.mxu0 %v579
    %v581 = vand.u32 %v418, 4294901760
    %v582 = vsub.f32 %v418, %v581
    %583 = vmatpush.msra.mxu0 %v582
    %v584 = vand.u32 %v417, 4294901760
    %v585 = vsub.f32 %v417, %v584
    %586 = vmatpush.msra.mxu0 %v585
    %v587 = vand.u32 %v416, 4294901760
    %v588 = vsub.f32 %v416, %v587
    %589 = vmatpush.msra.mxu0 %v588
    %v590 = vand.u32 %v415, 4294901760
    %v591 = vsub.f32 %v415, %v590
    %592 = vmatpush.msra.mxu0 %v591
    %v593 = vand.u32 %v414, 4294901760
    %v594 = vsub.f32 %v414, %v593
    %595 = vmatpush.msra.mxu0 %v594
    %v596 = vand.u32 %v413, 4294901760
    %v597 = vsub.f32 %v413, %v596
    %598 = vmatpush.msra.mxu0 %v597
    %v599 = vand.u32 %v412, 4294901760
    %v600 = vsub.f32 %v412, %v599
    %601 = vmatpush.msra.mxu0 %v600
    %v602 = vand.u32 %v411, 4294901760
    %v603 = vsub.f32 %v411, %v602
    %604 = vmatpush.msra.mxu0 %v603
    %v605 = vand.u32 %v410, 4294901760
    %v606 = vsub.f32 %v410, %v605
    %607 = vmatpush.msra.mxu0 %v606
    %v608 = vand.u32 %v409, 4294901760
    %v609 = vsub.f32 %v409, %v608
    %610 = vmatpush.msra.mxu0 %v609
    %v611 = vand.u32 %v408, 4294901760
    %v612 = vsub.f32 %v408, %v611
    %613 = vmatpush.msra.mxu0 %v612
    %v614 = vand.u32 %v407, 4294901760
    %v615 = vsub.f32 %v407, %v614
    %616 = vmatpush.msra.mxu0 %v615
    %v617 = vand.u32 %v24, 4294901760
    %v618 = vsub.f32 %v24, %v617
    %619 = vmatmul.f32.gmra.mxu0 %v618
    %v620 = vpop.f32.mrf.mxu0
    %v621 = vadd.f32 %v567, %v620
    %622 = vdwg.mxu0
    %v623 = vand.u32 %v422, 4294901760
    %624 = vmatpush.msra.mxu0 %v623
    %v625 = vand.u32 %v421, 4294901760
    %626 = vmatpush.msra.mxu0 %v625
    %v627 = vand.u32 %v420, 4294901760
    %628 = vmatpush.msra.mxu0 %v627
    %v629 = vand.u32 %v419, 4294901760
    %630 = vmatpush.msra.mxu0 %v629
    %v631 = vand.u32 %v418, 4294901760
    %632 = vmatpush.msra.mxu0 %v631
    %v633 = vand.u32 %v417, 4294901760
    %634 = vmatpush.msra.mxu0 %v633
    %v635 = vand.u32 %v416, 4294901760
    %636 = vmatpush.msra.mxu0 %v635
    %v637 = vand.u32 %v415, 4294901760
    %638 = vmatpush.msra.mxu0 %v637
    %v639 = vand.u32 %v414, 4294901760
    %640 = vmatpush.msra.mxu0 %v639
    %v641 = vand.u32 %v413, 4294901760
    %642 = vmatpush.msra.mxu0 %v641
    %v643 = vand.u32 %v412, 4294901760
    %644 = vmatpush.msra.mxu0 %v643
    %v645 = vand.u32 %v411, 4294901760
    %646 = vmatpush.msra.mxu0 %v645
    %v647 = vand.u32 %v410, 4294901760
    %648 = vmatpush.msra.mxu0 %v647
    %v649 = vand.u32 %v409, 4294901760
    %650 = vmatpush.msra.mxu0 %v649
    %v651 = vand.u32 %v408, 4294901760
    %652 = vmatpush.msra.mxu0 %v651
    %v653 = vand.u32 %v407, 4294901760
    %654 = vmatpush.msra.mxu0 %v653
    %v655 = vand.u32 %v24, 4294901760
    %v656 = vsub.f32 %v24, %v655
    %v657 = vand.u32 %v656, 4294901760
    %658 = vmatmul.f32.gmra.mxu0 %v657
    %v659 = vpop.f32.mrf.mxu0
    %v660 = vadd.f32 %v621, %v659
    %661 = vdwg.mxu0
    %v662 = vand.u32 %v422, 4294901760
    %v663 = vsub.f32 %v422, %v662
    %v664 = vand.u32 %v663, 4294901760
    %665 = vmatpush.msra.mxu0 %v664
    %v666 = vand.u32 %v421, 4294901760
    %v667 = vsub.f32 %v421, %v666
    %v668 = vand.u32 %v667, 4294901760
    %669 = vmatpush.msra.mxu0 %v668
    %v670 = vand.u32 %v420, 4294901760
    %v671 = vsub.f32 %v420, %v670
    %v672 = vand.u32 %v671, 4294901760
    %673 = vmatpush.msra.mxu0 %v672
    %v674 = vand.u32 %v419, 4294901760
    %v675 = vsub.f32 %v419, %v674
    %v676 = vand.u32 %v675, 4294901760
    %677 = vmatpush.msra.mxu0 %v676
    %v678 = vand.u32 %v418, 4294901760
    %v679 = vsub.f32 %v418, %v678
    %v680 = vand.u32 %v679, 4294901760
    %681 = vmatpush.msra.mxu0 %v680
    %v682 = vand.u32 %v417, 4294901760
    %v683 = vsub.f32 %v417, %v682
    %v684 = vand.u32 %v683, 4294901760
    %685 = vmatpush.msra.mxu0 %v684
    %v686 = vand.u32 %v416, 4294901760
    %v687 = vsub.f32 %v416, %v686
    %v688 = vand.u32 %v687, 4294901760
    %689 = vmatpush.msra.mxu0 %v688
    %v690 = vand.u32 %v415, 4294901760
    %v691 = vsub.f32 %v415, %v690
    %v692 = vand.u32 %v691, 4294901760
    %693 = vmatpush.msra.mxu0 %v692
    %v694 = vand.u32 %v414, 4294901760
    %v695 = vsub.f32 %v414, %v694
    %v696 = vand.u32 %v695, 4294901760
    %697 = vmatpush.msra.mxu0 %v696
    %v698 = vand.u32 %v413, 4294901760
    %v699 = vsub.f32 %v413, %v698
    %v700 = vand.u32 %v699, 4294901760
    %701 = vmatpush.msra.mxu0 %v700
    %v702 = vand.u32 %v412, 4294901760
    %v703 = vsub.f32 %v412, %v702
    %v704 = vand.u32 %v703, 4294901760
    %705 = vmatpush.msra.mxu0 %v704
    %v706 = vand.u32 %v411, 4294901760
    %v707 = vsub.f32 %v411, %v706
    %v708 = vand.u32 %v707, 4294901760
    %709 = vmatpush.msra.mxu0 %v708
    %v710 = vand.u32 %v410, 4294901760
    %v711 = vsub.f32 %v410, %v710
    %v712 = vand.u32 %v711, 4294901760
    %713 = vmatpush.msra.mxu0 %v712
    %v714 = vand.u32 %v409, 4294901760
    %v715 = vsub.f32 %v409, %v714
    %v716 = vand.u32 %v715, 4294901760
    %717 = vmatpush.msra.mxu0 %v716
    %v718 = vand.u32 %v408, 4294901760
    %v719 = vsub.f32 %v408, %v718
    %v720 = vand.u32 %v719, 4294901760
    %721 = vmatpush.msra.mxu0 %v720
    %v722 = vand.u32 %v407, 4294901760
    %v723 = vsub.f32 %v407, %v722
    %v724 = vand.u32 %v723, 4294901760
    %725 = vmatpush.msra.mxu0 %v724
    %v726 = vand.u32 %v24, 4294901760
    %727 = vmatmul.f32.gmra.mxu0 %v726
    %v728 = vpop.f32.mrf.mxu0
    %v729 = vadd.f32 %v660, %v728
    %730 = vdwg.mxu0
    %v731 = vand.u32 %v422, 4294901760
    %732 = vmatpush.msra.mxu0 %v731
    %v733 = vand.u32 %v421, 4294901760
    %734 = vmatpush.msra.mxu0 %v733
    %v735 = vand.u32 %v420, 4294901760
    %736 = vmatpush.msra.mxu0 %v735
    %v737 = vand.u32 %v419, 4294901760
    %738 = vmatpush.msra.mxu0 %v737
    %v739 = vand.u32 %v418, 4294901760
    %740 = vmatpush.msra.mxu0 %v739
    %v741 = vand.u32 %v417, 4294901760
    %742 = vmatpush.msra.mxu0 %v741
    %v743 = vand.u32 %v416, 4294901760
    %744 = vmatpush.msra.mxu0 %v743
    %v745 = vand.u32 %v415, 4294901760
    %746 = vmatpush.msra.mxu0 %v745
    %v747 = vand.u32 %v414, 4294901760
    %748 = vmatpush.msra.mxu0 %v747
    %v749 = vand.u32 %v413, 4294901760
    %750 = vmatpush.msra.mxu0 %v749
    %v751 = vand.u32 %v412, 4294901760
    %752 = vmatpush.msra.mxu0 %v751
    %v753 = vand.u32 %v411, 4294901760
    %754 = vmatpush.msra.mxu0 %v753
    %v755 = vand.u32 %v410, 4294901760
    %756 = vmatpush.msra.mxu0 %v755
    %v757 = vand.u32 %v409, 4294901760
    %758 = vmatpush.msra.mxu0 %v757
    %v759 = vand.u32 %v408, 4294901760
    %760 = vmatpush.msra.mxu0 %v759
    %v761 = vand.u32 %v407, 4294901760
    %762 = vmatpush.msra.mxu0 %v761
    %v763 = vand.u32 %v24, 4294901760
    %764 = vmatmul.f32.gmra.mxu0 %v763
    %v765 = vpop.f32.mrf.mxu0
    %v766 = vadd.f32 %v729, %v765
    %767 = vdwg.mxu0
    %vm768 = vcmask 74752
    %v769 = vsel %vm768, %v766, -inf
    %770 = vmax.xlane.f32.xlu0 %v769
    %v771 = vpop.xlane.xlu0 %770
    %v772 = vsub.f32 %v766, %v771
    %v773 = vmul.f32 %v772, 1.442695
    %v774 = vpow.pop %v773
    %v775 = vsel %vm768, %v774, 0.0
    %776 = vadd.xlane.f32.xlu0 %v775
    %v777 = vpop.xlane.xlu0 %776
    %v778 = vlog2.pop %v777
    %v779 = vmul.f32 %v778, 0.6931472
    %v780 = vsub.f32 %v772, %v779
    %781 = vst.msk [vmem:[#allocation4] sm:$0x3] %vm768, %v780
    // Predicated region
    $region22: #{linear_unit_forward.1} parent=1 // pred_check
      _
    $region23: #{linear_unit_forward.1} parent=1 // pred_check_branch
      %783 = sbr.rel (0) target = $region25
    $region24: #{linear_unit_forward.1} parent=1 // pred_region
      %785 = vsyncadd [#allocation3], 0
      %s787 = sshll.u32 [#allocation2], 4
      %s788 = int_to_ptr.vmem [resolvable:$true] %s787
      %s789 = sshll.u32 %s5, 4
      %s790 = int_to_ptr.hbm [resolvable:$true] %s789
      %792 = dma.vmem_to_hbm [thread:$0]  %s788, 32, %s790, [#allocation3]
    $region25: #{linear_unit_forward.1} parent=1 // pred_fallthru
      _
    // Predicated region
    $region26: #{linear_unit_forward.1} parent=1 // pred_check
      _
    $region27: #{linear_unit_forward.1} parent=1 // pred_check_branch
      %794 = sbr.rel (0) target = $region29
    $region28: #{linear_unit_forward.1} parent=1 // pred_region
      %796 = vsyncadd [#allocation5], 0
      %s798 = sshll.u32 [#allocation4], 4
      %s799 = int_to_ptr.vmem [resolvable:$true] %s798
      %s800 = sshll.u32 %s6, 4
      %s801 = int_to_ptr.hbm [resolvable:$true] %s800
      %803 = dma.vmem_to_hbm [thread:$0]  %s799, 32, %s801, [#allocation5]
    $region29: #{linear_unit_forward.1} parent=1 // pred_fallthru
      _
    // Predicated region
    $region30: #{linear_unit_forward.1} parent=1 // pred_check
      _
    $region31: #{linear_unit_forward.1} parent=1 // pred_check_branch
      %805 = sbr.rel (0) target = $region33
    $region32: #{linear_unit_forward.1} parent=1 // pred_region
      %807 = dma.done [#allocation3], 32
    $region33: #{linear_unit_forward.1} parent=1 // pred_fallthru
      _
    // Predicated region
    $region34: #{linear_unit_forward.1} parent=1 // pred_check
      _
    $region35: #{linear_unit_forward.1} parent=1 // pred_check_branch
      %809 = sbr.rel (0) target = $region37
    $region36: #{linear_unit_forward.1} parent=1 // pred_region
      %811 = dma.done [#allocation5], 32
    $region37: #{linear_unit_forward.1} parent=1 // pred_fallthru
      _
    %812 = vsyncpa [#allocation3], 1
    %813 = vsyncpa [#allocation5], 1

</llo_original>
